<compile_context>
chip_gen: v6e
topology: v6e:2x2x1
jax: 0.10.0
libtpu: 0.0.40
codegen_flags: <defaults>
</compile_context>

<pallas_src>
import numpy as np
import jax
import jax.numpy as jnp
from jax.experimental import pallas as pl
from jax.experimental.pallas import tpu as pltpu


def _make_dma_concat_kernel(col_sizes):
    """Kernel concatenating 2-D (outer, cols_i) HBM slabs along axis 1 via
    direct HBM->HBM async copies (no VMEM staging)."""
    offsets = np.cumsum([0] + list(col_sizes))
    n = len(col_sizes)

    def kernel(*refs):
        in_refs = refs[:n]
        out_ref = refs[n]
        sem = refs[n + 1]

        copies = []
        for i, (r, off, cols) in enumerate(zip(in_refs, offsets[:-1], col_sizes)):
            # Static column window of the output (strided HBM destination).
            dst = out_ref.at[:, pl.ds(int(off), int(cols))]
            cp = pltpu.make_async_copy(r, dst, sem.at[i])
            cp.start()
            copies.append(cp)
        # Wait after issuing all copies so the DMA engine overlaps them.
        for cp in copies:
            cp.wait()

    return kernel


def pallas_concat(xs, dim=1):
    """Equivalent of torch.cat(xs, dim=dim) (tuple/list of arrays)."""
    xs = list(xs)
    rank = xs[0].ndim
    dim = dim % rank

    # torch.cat-style type promotion (no-op when dtypes already match).
    dtype = jnp.result_type(*[x.dtype for x in xs])
    xs = [x.astype(dtype) for x in xs]

    shapes = [x.shape for x in xs]
    concat_sizes = [int(s[dim]) for s in shapes]
    total = int(sum(concat_sizes))
    out_shape = list(shapes[0])
    out_shape[dim] = total
    out_shape = tuple(out_shape)

    # Free reshapes (no transpose): collapse leading dims into `outer`, and the
    # concat dim together with all trailing dims into the column axis.
    outer = int(np.prod(shapes[0][:dim])) if dim > 0 else 1
    inner = int(np.prod(shapes[0][dim + 1:])) if dim + 1 < rank else 1

    flats = [x.reshape(outer, c * inner) for x, c in zip(xs, concat_sizes)]
    col_sizes = [c * inner for c in concat_sizes]
    total_cols = total * inner

    kernel = _make_dma_concat_kernel(col_sizes)

    itemsize = jnp.dtype(dtype).itemsize
    total_bytes = sum(int(np.prod(s)) for s in shapes) * itemsize

    out2d = pl.pallas_call(
        kernel,
        out_shape=jax.ShapeDtypeStruct((outer, total_cols), dtype),
        # Raw HBM refs: no BlockSpec tiling, no VMEM residency.
        in_specs=[pl.BlockSpec(memory_space=pl.ANY) for _ in flats],
        out_specs=pl.BlockSpec(memory_space=pl.ANY),
        scratch_shapes=[pltpu.SemaphoreType.DMA((len(flats),))],
        cost_estimate=pl.CostEstimate(
            flops=0, transcendentals=0, bytes_accessed=2 * total_bytes),
    )(*flats)

    # Free reshape back to the logical output layout.
    return out2d.reshape(out_shape)


class Concat:
    """Mirror of the PyTorch module (dim defaults to 1, NCHW channel axis)."""

    def __init__(self, dim=1):
        self.dim = dim

    def __call__(self, *xs):
        # decorator_tuple_to_args semantics: a single tuple/list arg unpacks.
        if len(xs) == 1 and isinstance(xs[0], (tuple, list)):
            xs = tuple(xs[0])
        return pallas_concat(xs, dim=self.dim)


if __name__ == "__main__":
    key = jax.random.PRNGKey(0)
    k1, k2, k3 = jax.random.split(key, 3)

    # NCHW inputs with differing channel counts (concat along dim=1).
    x1 = jax.random.normal(k1, (2, 4, 16, 16), dtype=jnp.float32)
    x2 = jax.random.normal(k2, (2, 3, 16, 16), dtype=jnp.float32)
    x3 = jax.random.normal(k3, (2, 5, 16, 16), dtype=jnp.float32)

    module = Concat(dim=1)
    out = module((x1, x2, x3))   # tuple arg, like the decorated forward
    out = jax.block_until_ready(out)

    ref = jnp.concatenate([x1, x2, x3], axis=1)
    assert out.shape == (2, 12, 16, 16), out.shape
    np.testing.assert_allclose(np.asarray(out), np.asarray(ref), rtol=0, atol=0)

    print("KERNEL_OK")
</pallas_src>

<mosaic_0001>
module attributes {stable_mosaic.version = 11 : i64} {
  func.func @kernel(%arg0: memref<2x1024xf32, #tpu.memory_space<any>>, %arg1: memref<2x768xf32, #tpu.memory_space<any>>, %arg2: memref<2x1280xf32, #tpu.memory_space<any>>, %arg3: memref<2x3072xf32, #tpu.memory_space<any>>, %arg4: memref<3x!tpu.dma_semaphore, #tpu.memory_space<semaphore_mem>>) attributes {dimension_semantics = [], scalar_prefetch = 0 : i64, scratch_operands = 1 : i64, tpu.core_type = #tpu.core_type<tc>} {
    %c0_i32 = arith.constant 0 : i32
    %c0_i32_0 = arith.constant 0 : i32
    %c0_i32_1 = arith.constant 0 : i32
    %0 = tpu.memref_slice %arg3[%c0_i32_0, %c0_i32_1] : memref<2x3072xf32, #tpu.memory_space<any>> -> memref<2x1024xf32, #tpu.memory_space<any>>
    %1 = tpu.memref_slice %arg4[%c0_i32] : memref<3x!tpu.dma_semaphore, #tpu.memory_space<semaphore_mem>> -> memref<1x!tpu.dma_semaphore, #tpu.memory_space<semaphore_mem>>
    %2 = tpu.memref_squeeze %1 : memref<1x!tpu.dma_semaphore, #tpu.memory_space<semaphore_mem>> -> memref<!tpu.dma_semaphore, #tpu.memory_space<semaphore_mem>>
    tpu.enqueue_dma source(%arg0 : memref<2x1024xf32, #tpu.memory_space<any>>) target(%0 : memref<2x1024xf32, #tpu.memory_space<any>>) target_semaphore(%2 : memref<!tpu.dma_semaphore, #tpu.memory_space<semaphore_mem>>)
    %c1_i32 = arith.constant 1 : i32
    %c0_i32_2 = arith.constant 0 : i32
    %c1024_i32 = arith.constant 1024 : i32
    %3 = tpu.memref_slice %arg3[%c0_i32_2, %c1024_i32] : memref<2x3072xf32, #tpu.memory_space<any>> -> memref<2x768xf32, #tpu.memory_space<any>>
    %4 = tpu.memref_slice %arg4[%c1_i32] : memref<3x!tpu.dma_semaphore, #tpu.memory_space<semaphore_mem>> -> memref<1x!tpu.dma_semaphore, #tpu.memory_space<semaphore_mem>>
    %5 = tpu.memref_squeeze %4 : memref<1x!tpu.dma_semaphore, #tpu.memory_space<semaphore_mem>> -> memref<!tpu.dma_semaphore, #tpu.memory_space<semaphore_mem>>
    tpu.enqueue_dma source(%arg1 : memref<2x768xf32, #tpu.memory_space<any>>) target(%3 : memref<2x768xf32, #tpu.memory_space<any>>) target_semaphore(%5 : memref<!tpu.dma_semaphore, #tpu.memory_space<semaphore_mem>>)
    %c2_i32 = arith.constant 2 : i32
    %c0_i32_3 = arith.constant 0 : i32
    %c1792_i32 = arith.constant 1792 : i32
    %6 = tpu.memref_slice %arg3[%c0_i32_3, %c1792_i32] : memref<2x3072xf32, #tpu.memory_space<any>> -> memref<2x1280xf32, #tpu.memory_space<any>>
    %7 = tpu.memref_slice %arg4[%c2_i32] : memref<3x!tpu.dma_semaphore, #tpu.memory_space<semaphore_mem>> -> memref<1x!tpu.dma_semaphore, #tpu.memory_space<semaphore_mem>>
    %8 = tpu.memref_squeeze %7 : memref<1x!tpu.dma_semaphore, #tpu.memory_space<semaphore_mem>> -> memref<!tpu.dma_semaphore, #tpu.memory_space<semaphore_mem>>
    tpu.enqueue_dma source(%arg2 : memref<2x1280xf32, #tpu.memory_space<any>>) target(%6 : memref<2x1280xf32, #tpu.memory_space<any>>) target_semaphore(%8 : memref<!tpu.dma_semaphore, #tpu.memory_space<semaphore_mem>>)
    %c0_i32_4 = arith.constant 0 : i32
    %c0_i32_5 = arith.constant 0 : i32
    %c0_i32_6 = arith.constant 0 : i32
    %9 = tpu.memref_slice %arg3[%c0_i32_5, %c0_i32_6] : memref<2x3072xf32, #tpu.memory_space<any>> -> memref<2x1024xf32, #tpu.memory_space<any>>
    %10 = tpu.memref_slice %arg4[%c0_i32_4] : memref<3x!tpu.dma_semaphore, #tpu.memory_space<semaphore_mem>> -> memref<1x!tpu.dma_semaphore, #tpu.memory_space<semaphore_mem>>
    %11 = tpu.memref_squeeze %10 : memref<1x!tpu.dma_semaphore, #tpu.memory_space<semaphore_mem>> -> memref<!tpu.dma_semaphore, #tpu.memory_space<semaphore_mem>>
    tpu.wait_dma2 semaphore(%11 : memref<!tpu.dma_semaphore, #tpu.memory_space<semaphore_mem>>) src(%arg0 : memref<2x1024xf32, #tpu.memory_space<any>>) dst(%9 : memref<2x1024xf32, #tpu.memory_space<any>>)
    %c1_i32_7 = arith.constant 1 : i32
    %c0_i32_8 = arith.constant 0 : i32
    %c1024_i32_9 = arith.constant 1024 : i32
    %12 = tpu.memref_slice %arg3[%c0_i32_8, %c1024_i32_9] : memref<2x3072xf32, #tpu.memory_space<any>> -> memref<2x768xf32, #tpu.memory_space<any>>
    %13 = tpu.memref_slice %arg4[%c1_i32_7] : memref<3x!tpu.dma_semaphore, #tpu.memory_space<semaphore_mem>> -> memref<1x!tpu.dma_semaphore, #tpu.memory_space<semaphore_mem>>
    %14 = tpu.memref_squeeze %13 : memref<1x!tpu.dma_semaphore, #tpu.memory_space<semaphore_mem>> -> memref<!tpu.dma_semaphore, #tpu.memory_space<semaphore_mem>>
    tpu.wait_dma2 semaphore(%14 : memref<!tpu.dma_semaphore, #tpu.memory_space<semaphore_mem>>) src(%arg1 : memref<2x768xf32, #tpu.memory_space<any>>) dst(%12 : memref<2x768xf32, #tpu.memory_space<any>>)
    %c2_i32_10 = arith.constant 2 : i32
    %c0_i32_11 = arith.constant 0 : i32
    %c1792_i32_12 = arith.constant 1792 : i32
    %15 = tpu.memref_slice %arg3[%c0_i32_11, %c1792_i32_12] : memref<2x3072xf32, #tpu.memory_space<any>> -> memref<2x1280xf32, #tpu.memory_space<any>>
    %16 = tpu.memref_slice %arg4[%c2_i32_10] : memref<3x!tpu.dma_semaphore, #tpu.memory_space<semaphore_mem>> -> memref<1x!tpu.dma_semaphore, #tpu.memory_space<semaphore_mem>>
    %17 = tpu.memref_squeeze %16 : memref<1x!tpu.dma_semaphore, #tpu.memory_space<semaphore_mem>> -> memref<!tpu.dma_semaphore, #tpu.memory_space<semaphore_mem>>
    tpu.wait_dma2 semaphore(%17 : memref<!tpu.dma_semaphore, #tpu.memory_space<semaphore_mem>>) src(%arg2 : memref<2x1280xf32, #tpu.memory_space<any>>) dst(%15 : memref<2x1280xf32, #tpu.memory_space<any>>)
    return
  }
}

</mosaic_0001>

<llo_original>
// kernel: tpu_custom_call.1
$region0: #{tpu_custom_call.1}
  #allocation0 [shape = 'u32[]', space=smem, size = 0x4, offset = 0x4, fixed_abs, tag = 'smem constant byte address 0x4 - core index']
  #allocation1 [shape = 'u32[144,128]{1,0:T(1,128)}', space=vmem, size = 0x12000, scoped, tag = 'internal scratch']
  #allocation2 [shape = 's32[3]{0}', space=sflag, size = 0xc, scoped, tag = 'scratch operand']
  #allocation3 [shape = 's32[]', space=sflag, size = 0x4, offset = 0, fixed_abs, tag = 'sflag constant byte address 0x0 - dummy sync flag']
  #allocation4 [shape = 'u32[0]{0}', space=smem, size = 0, offset = 0, fixed_abs, tag = 'smem constant byte address 0x0 - null']
  #allocation5 [shape = 's32[]', space=sflag, size = 0x4, offset = 0, fixed_abs, tag = 'sflag constant byte address 0x0 - dummy sync flag']
  #allocation6 [shape = 'u32[0]{0}', space=smem, size = 0, offset = 0, fixed_abs, tag = 'smem constant byte address 0x0 - null']
  #allocation7 [shape = 's32[]', space=sflag, size = 0x4, offset = 0, fixed_abs, tag = 'sflag constant byte address 0x0 - dummy sync flag']
  #allocation8 [shape = 'u32[0]{0}', space=smem, size = 0, offset = 0, fixed_abs, tag = 'smem constant byte address 0x0 - null']
  %s0 = inlined_call_operand.hbm [shape: f32[2,1024], index: 0, kind: input, shape index: {}]
  %s1 = inlined_call_operand.hbm [shape: f32[2,768], index: 1, kind: input, shape index: {}]
  %s2 = inlined_call_operand.hbm [shape: f32[2,1280], index: 2, kind: input, shape index: {}]
  %s3 = inlined_call_operand.hbm [shape: f32[2,3072], index: 3, kind: output, shape index: {}]
  %s4 = sld [smem:[#allocation0]]
  $region2: #{tpu_custom_call.1} parent=0
    _
  %s6 = ssub.s32 1, %s4
  %s7 = scalar_select 0, %s6, %s4
  %s9 = sshll.u32 1, 14
  %s10 = sxor.u32 4294967295, %s9
  %14 = dma.general %s0, 256, %s3, [#allocation2], 131072, [#allocation4], 0, 0
  %s15 = scalar_lea.hbm %s3, 256
  %s16 = scalar_lea.sflag [#allocation2], 1
  %s18 = sshll.u32 1, 14
  %s19 = sxor.u32 4294967295, %s18
  %23 = dma.general %s1, 192, %s15, %s16, 131072, [#allocation6], 0, 0
  %s24 = scalar_lea.hbm %s3, 448
  %s25 = scalar_lea.sflag [#allocation2], 2
  %s27 = sshll.u32 1, 14
  %s28 = sxor.u32 4294967295, %s27
  %32 = dma.general %s2, 320, %s24, %s25, 131072, [#allocation8], 0, 0
  %s33 = smul.u32 2, 1
  %s34 = smul.u32 %s33, 8
  %s35 = sshll.u32 %s34, 4
  %36 = dma.done [#allocation2], %s35
  %s37 = smul.u32 %s33, 6
  %s38 = sshll.u32 %s37, 4
  %39 = dma.done %s16, %s38
  %s40 = smul.u32 %s33, 10
  %s41 = sshll.u32 %s40, 4
  %42 = dma.done %s25, %s41
  %43 = vsyncmov [#allocation2]
  %s44 = vpop.sfrf %43
  %p45 = scmp.eq.s32.totalorder %s44, 0
  %p46 = pneg %p45
  %48 = shalt.err (%p46)
  %s49 = scalar_lea.sflag [#allocation2], 1
  %50 = vsyncmov %s49
  %s51 = vpop.sfrf %50
  %p52 = scmp.eq.s32.totalorder %s51, 0
  %p53 = pneg %p52
  %55 = shalt.err (%p53)
  %s56 = scalar_lea.sflag [#allocation2], 2
  %57 = vsyncmov %s56
  %s58 = vpop.sfrf %57
  %p59 = scmp.eq.s32.totalorder %s58, 0
  %p60 = pneg %p59
  %62 = shalt.err (%p60)

</llo_original>
